<compile_context>
chip_gen: v6e
topology: v6e:2x2x1
jax: 0.10.0
libtpu: 0.0.40
codegen_flags: <defaults>
</compile_context>

<pallas_src>
import functools
from typing import NamedTuple, Optional, Any

import jax
import jax.numpy as jnp
from jax.experimental import pallas as pl
from jax.experimental.pallas import tpu as pltpu


def _pick_lane_tile(hw: int, target: int) -> int:
    """Largest tile <= target that is a multiple of 128 and divides hw, else hw."""
    if hw <= target:
        return hw
    t = (min(target, hw) // 128) * 128
    while t >= 128:
        if hw % t == 0:
            return t
        t -= 128
    # TODO(synk): hw has no 128-multiple divisor <= target; fall back to one block
    # per batch (real resolutions are multiples of 128 and never hit this).
    return hw


# ----------------------------------------------------------------------------
# Kernel 1: fused pixel-level heads, channel-major.
#   y = W_feat^T @ feat_block + W_img^T @ img_block + b          (O, tile_hw)
#   rows [0, OCR_OUT)  -> OCR logits (no activation)
#   row  OCR_OUT       -> alpha (sigmoid)
# ----------------------------------------------------------------------------

def _pixel_heads_kernel(feat_ref, img_ref, wf_ref, wi_ref, b_ref,
                        ocr_ref, alpha_ref, *, ocr_out):
    x = feat_ref[0]                                   # (C, t)   lane-dense
    xi = img_ref[0]                                   # (Ci, t)
    y = jnp.dot(wf_ref[...], x, preferred_element_type=jnp.float32)
    y = y + jnp.dot(wi_ref[...], xi, preferred_element_type=jnp.float32)
    y = y + b_ref[...]                                # (O, 1) broadcast over lanes
    ocr_ref[0] = y[:ocr_out].astype(ocr_ref.dtype)
    alpha_ref[0] = jax.nn.sigmoid(y[ocr_out:]).astype(alpha_ref.dtype)


def pallas_pixel_heads(feat_cm, img_cm, w_feat_t, w_img_t, bias_col, *, ocr_out,
                       vmem_budget=8 << 20):
    """feat_cm: (B, C, HW), img_cm: (B, Ci, HW), w_feat_t: (O, C), w_img_t: (O, Ci),
    bias_col: (O, 1)  ->  (ocr (B, ocr_out, HW), alpha (B, O - ocr_out, HW))."""
    B, C, HW = feat_cm.shape
    Ci = img_cm.shape[1]
    O = w_feat_t.shape[0]
    itemsize = jnp.dtype(feat_cm.dtype).itemsize
    # Double-buffered input footprint per lane ~ 2*(C+Ci)*itemsize; stay under budget.
    target = max(128, vmem_budget // (2 * (C + Ci) * itemsize))
    t = _pick_lane_tile(HW, target)

    return pl.pallas_call(
        functools.partial(_pixel_heads_kernel, ocr_out=ocr_out),
        out_shape=(jax.ShapeDtypeStruct((B, ocr_out, HW), jnp.float32),
                   jax.ShapeDtypeStruct((B, O - ocr_out, HW), jnp.float32)),
        grid=(B, HW // t),
        in_specs=[
            pl.BlockSpec((1, C, t), lambda b, s: (b, 0, s)),
            pl.BlockSpec((1, Ci, t), lambda b, s: (b, 0, s)),
            pl.BlockSpec((O, C), lambda b, s: (0, 0)),
            pl.BlockSpec((O, Ci), lambda b, s: (0, 0)),
            pl.BlockSpec((O, 1), lambda b, s: (0, 0)),
        ],
        out_specs=(pl.BlockSpec((1, ocr_out, t), lambda b, s: (b, 0, s)),
                   pl.BlockSpec((1, O - ocr_out, t), lambda b, s: (b, 0, s))),
        compiler_params=pltpu.CompilerParams(
            dimension_semantics=("parallel", "parallel"),
            vmem_limit_bytes=32 * 1024 * 1024),
    )(feat_cm, img_cm, w_feat_t, w_img_t, bias_col)


# ----------------------------------------------------------------------------
# Kernel 2: masked average pooling (tiled HW reduction) fused with the five
# box-level MLP heads at the finalize step.
#   acc_sum[t,c] += sum_hw mask[t,hw] * feat[c,hw]      (per HW tile)
#   acc_cnt[t]   += sum_hw mask[t,hw]
#   at last tile: pooled = acc_sum / max(acc_cnt, 1)
#                 y = relu(pooled @ W1 + b1) @ W2 + b2 ; sigmoid on vis cols
# ----------------------------------------------------------------------------

def _pool_box_kernel(mask_ref, feat_ref, w1_ref, b1_ref, w2_ref, b2_ref,
                     o_ref, acc_sum, acc_cnt, *, sigmoid_end):
    s = pl.program_id(1)

    @pl.when(s == 0)
    def _():
        acc_sum[...] = jnp.zeros_like(acc_sum)
        acc_cnt[...] = jnp.zeros_like(acc_cnt)

    m = mask_ref[0].astype(jnp.float32)               # (T, t)  cast in-kernel (free)
    f = feat_ref[0].astype(jnp.float32)               # (C, t)
    acc_sum[...] += jax.lax.dot_general(
        m, f, (((1,), (1,)), ((), ())), preferred_element_type=jnp.float32)  # (T, C)
    acc_cnt[...] += jnp.sum(m, axis=-1, keepdims=True)                        # (T, 1)

    @pl.when(s == pl.num_programs(1) - 1)
    def _():
        pooled = acc_sum[...] / jnp.maximum(acc_cnt[...], 1.0)                # (T, C)
        h = jnp.dot(pooled, w1_ref[...], preferred_element_type=jnp.float32)
        h = jnp.maximum(h + b1_ref[...], 0.0)
        y = jnp.dot(h, w2_ref[...], preferred_element_type=jnp.float32)
        y = y + b2_ref[...]
        col = jax.lax.broadcasted_iota(jnp.int32, y.shape, 1)
        y = jnp.where(col < sigmoid_end, jax.nn.sigmoid(y), y)
        o_ref[0] = y.astype(o_ref.dtype)


def pallas_pool_box_heads(mask_cm, feat_cm, w1, b1, w2, b2, *, sigmoid_end,
                          vmem_budget=8 << 20):
    """mask_cm: (B, T, HW) int8/bool/float, feat_cm: (B, C, HW) -> (B, T, O_total)."""
    B, T, HW = mask_cm.shape
    C = feat_cm.shape[1]
    Hd = w1.shape[1]
    O = w2.shape[1]
    f_item = jnp.dtype(feat_cm.dtype).itemsize
    m_item = jnp.dtype(mask_cm.dtype).itemsize
    per_lane = 2 * (C * f_item + T * m_item)          # double-buffered bytes per lane
    target = max(128, vmem_budget // per_lane)
    t = _pick_lane_tile(HW, target)

    return pl.pallas_call(
        functools.partial(_pool_box_kernel, sigmoid_end=sigmoid_end),
        out_shape=jax.ShapeDtypeStruct((B, T, O), jnp.float32),
        grid=(B, HW // t),
        in_specs=[
            pl.BlockSpec((1, T, t), lambda b, s: (b, 0, s)),
            pl.BlockSpec((1, C, t), lambda b, s: (b, 0, s)),
            pl.BlockSpec((C, Hd), lambda b, s: (0, 0)),
            pl.BlockSpec((1, Hd), lambda b, s: (0, 0)),
            pl.BlockSpec((Hd, O), lambda b, s: (0, 0)),
            pl.BlockSpec((1, O), lambda b, s: (0, 0)),
        ],
        out_specs=pl.BlockSpec((1, T, O), lambda b, s: (b, 0, 0)),
        scratch_shapes=[pltpu.VMEM((T, C), jnp.float32),
                        pltpu.VMEM((T, 1), jnp.float32)],
        compiler_params=pltpu.CompilerParams(
            dimension_semantics=("parallel", "arbitrary"),
            vmem_limit_bytes=32 * 1024 * 1024),
    )(mask_cm, feat_cm, w1, b1, w2, b2)


# ----------------------------------------------------------------------------
# Module
# ----------------------------------------------------------------------------

class TextInfo(NamedTuple):
    ocr_outs: Any
    bbox_information: Any
    effect_visibility: Any
    effect_params: Any
    font: Any
    charseg: Any
    alpha: Any


class TextParser:
    OCR_OUT = 2          # text-region / centerline scores
    N_SHADOW_PARAM = 4
    N_STROKE_PARAM = 2
    N_SHADOW_VIS = 2
    N_STROKE_VIS = 2
    N_FONTS = 10
    IMG_CH = 3

    def __init__(self, e_channel: int = 32, t_channel: int = 16, key=None,
                 param_dtype=jnp.float32):
        if key is None:
            key = jax.random.PRNGKey(0)
        ks = jax.random.split(key, 16)
        s = 0.05
        # param_dtype=bf16 halves weight DMA (matmul operands) on v6e/v7x if the
        # upstream producer already emits bf16 features; inputs are NEVER cast in
        # the wrapper (that would add a full HBM pass), accumulation stays f32.
        pd = param_dtype

        def w(k, shape):
            return jax.random.normal(k, shape, jnp.float32) * s

        e, t = e_channel, t_channel
        # InnerOCR head (1x1 conv).
        ocr_w = w(ks[0], (e, self.OCR_OUT))
        ocr_b = jnp.zeros((self.OCR_OUT,), jnp.float32)
        # EffectParamEstimator: two MLP branches (shadow, stroke).
        ep_sh = (w(ks[1], (e, t)), jnp.zeros((t,)), w(ks[2], (t, self.N_SHADOW_PARAM)), jnp.zeros((self.N_SHADOW_PARAM,)))
        ep_st = (w(ks[3], (e, t)), jnp.zeros((t,)), w(ks[4], (t, self.N_STROKE_PARAM)), jnp.zeros((self.N_STROKE_PARAM,)))
        # EffectVisibilityEstimator: two MLP branches (sigmoid outputs).
        ev_sh = (w(ks[5], (e, t)), jnp.zeros((t,)), w(ks[6], (t, self.N_SHADOW_VIS)), jnp.zeros((self.N_SHADOW_VIS,)))
        ev_st = (w(ks[7], (e, t)), jnp.zeros((t,)), w(ks[8], (t, self.N_STROKE_VIS)), jnp.zeros((self.N_STROKE_VIS,)))
        # FontEstimator: MLP -> font logits.
        font_p = (w(ks[9], (e, t)), jnp.zeros((t,)), w(ks[10], (t, self.N_FONTS)), jnp.zeros((self.N_FONTS,)))
        # AlphaEstimator: 1x1 conv over [features_pix ; img_org] -> 1 channel, sigmoid.
        alpha_w = w(ks[11], (e + self.IMG_CH, 1))
        alpha_b = jnp.zeros((1,), jnp.float32)

        # --- Fused pixel-head weights, TRANSPOSED for channel-major kernels ---
        # rows: [ocr(2) | alpha(1)]
        O = self.OCR_OUT + 1
        w_feat = jnp.concatenate([ocr_w, alpha_w[:e]], axis=1)                      # (e, 3)
        w_img = jnp.concatenate(
            [jnp.zeros((self.IMG_CH, self.OCR_OUT), jnp.float32), alpha_w[e:]], axis=1)  # (3, 3)
        self.pix_w_feat_t = w_feat.T.astype(pd)                                     # (3, e)
        self.pix_w_img_t = w_img.T.astype(pd)                                       # (3, 3)
        self.pix_b_col = jnp.concatenate([ocr_b, alpha_b]).reshape(O, 1)            # (3, 1)

        # --- Fused box-head weights, column order [ev_sh, ev_st, ep_sh, ep_st, font] ---
        heads = [ev_sh, ev_st, ep_sh, ep_st, font_p]
        self.box_out_dims = [self.N_SHADOW_VIS, self.N_STROKE_VIS,
                             self.N_SHADOW_PARAM, self.N_STROKE_PARAM, self.N_FONTS]
        n_out_total = sum(self.box_out_dims)
        self.box_w1 = jnp.concatenate([h[0] for h in heads], axis=1).astype(pd)     # (e, 5t)
        self.box_b1 = jnp.concatenate([h[1] for h in heads]).reshape(1, -1)         # (1, 5t)
        w2_bd = jnp.zeros((len(heads) * t, n_out_total), jnp.float32)
        r = c = 0
        for h, o in zip(heads, self.box_out_dims):
            w2_bd = w2_bd.at[r:r + t, c:c + o].set(h[2])
            r += t
            c += o
        self.box_w2 = w2_bd.astype(pd)                                              # (5t, 20)
        self.box_b2 = jnp.concatenate([h[3] for h in heads]).reshape(1, -1)         # (1, 20)
        self.box_sigmoid_end = self.N_SHADOW_VIS + self.N_STROKE_VIS                # first 4 cols

    def __call__(self, features_pix, img_org, text_instance_mask: Optional[jnp.ndarray] = None):
        B, C, H, W = features_pix.shape
        HW = H * W

        # Channel-major views (metadata-only reshapes, no HBM copy, no transpose).
        feat_cm = features_pix.reshape(B, C, HW)
        img_cm = img_org.reshape(B, self.IMG_CH, HW)

        # ---- Fused pixel heads: OCR (no act) + alpha (sigmoid), NCHW out ----
        ocr_flat, alpha_flat = pallas_pixel_heads(
            feat_cm, img_cm, self.pix_w_feat_t, self.pix_w_img_t, self.pix_b_col,
            ocr_out=self.OCR_OUT)
        ocr_outs = ocr_flat.reshape(B, self.OCR_OUT, H, W)
        alpha_outs = alpha_flat.reshape(B, 1, H, W)

        if text_instance_mask is None:
            # TODO(synk): get_bbox() runs CPU/numpy connected-component analysis on the
            # OCR maps; no Pallas equivalent — a text_instance_mask must be supplied.
            raise NotImplementedError("bbox extraction (numpy) not translatable; pass text_instance_mask")
        bbox_information = None

        # ---- Fused masked average pooling + all five box-level MLP heads ----
        T = text_instance_mask.shape[1]
        mask_cm = text_instance_mask.reshape(B, T, HW)
        if mask_cm.dtype == jnp.bool_:
            mask_cm = mask_cm.astype(jnp.int8)   # narrow DMA; cast to f32 in-kernel
        box_out = pallas_pool_box_heads(mask_cm, feat_cm, self.box_w1, self.box_b1,
                                        self.box_w2, self.box_b2,
                                        sigmoid_end=self.box_sigmoid_end)   # (B, T, 20)

        d0, d1, d2, d3, d4 = self.box_out_dims
        c0 = 0
        ev_sh = box_out[:, :, c0:c0 + d0]; c0 += d0
        ev_st = box_out[:, :, c0:c0 + d1]; c0 += d1
        ep_sh = box_out[:, :, c0:c0 + d2]; c0 += d2
        ep_st = box_out[:, :, c0:c0 + d3]; c0 += d3
        font = box_out[:, :, c0:c0 + d4]

        # Already (batch, text_num, D) — convert_shape is a no-op here.
        effect_visibility_outs = [ev_sh, ev_st]
        effect_param_outs = [ep_sh, ep_st]
        font_outs = font

        return TextInfo(ocr_outs, bbox_information, effect_visibility_outs,
                        effect_param_outs, font_outs, None, alpha_outs)


# ----------------------------------------------------------------------------
# Main
# ----------------------------------------------------------------------------

if __name__ == "__main__":
    key = jax.random.PRNGKey(0)
    k_feat, k_img, k_params = jax.random.split(key, 3)

    B, E_CH, T_CH, H, W, T = 2, 32, 16, 8, 8, 4

    features_pix = jax.random.normal(k_feat, (B, E_CH, H, W), jnp.float32)
    img_org = jax.random.normal(k_img, (B, 3, H, W), jnp.float32)

    # Deterministic text-instance masks (int8): each of the T=4 instances covers
    # one 4x4 quadrant of the 8x8 map (non-empty, non-overlapping).
    hh = jnp.arange(H)[:, None] // (H // 2)          # (H,1) in {0,1}
    ww = jnp.arange(W)[None, :] // (W // 2)          # (1,W) in {0,1}
    quad = (hh * 2 + ww)                              # (H,W) in {0..3}
    text_instance_mask = (quad[None, None, :, :] == jnp.arange(T)[None, :, None, None])
    text_instance_mask = jnp.broadcast_to(text_instance_mask, (B, T, H, W)).astype(jnp.int8)

    model = TextParser(e_channel=E_CH, t_channel=T_CH, key=k_params)
    out = model(features_pix, img_org, text_instance_mask)

    jax.block_until_ready(jax.tree_util.tree_leaves(out))

    assert out.ocr_outs.shape == (B, TextParser.OCR_OUT, H, W)
    assert out.alpha.shape == (B, 1, H, W)
    assert out.font.shape == (B, T, TextParser.N_FONTS)
    assert out.effect_params[0].shape == (B, T, TextParser.N_SHADOW_PARAM)
    assert out.effect_params[1].shape == (B, T, TextParser.N_STROKE_PARAM)
    assert out.effect_visibility[0].shape == (B, T, TextParser.N_SHADOW_VIS)
    assert out.effect_visibility[1].shape == (B, T, TextParser.N_STROKE_VIS)

    print("KERNEL_OK")
</pallas_src>

<mosaic_0001>
module attributes {stable_mosaic.version = 11 : i64} {
  func.func @_pixel_heads_kernel(%arg0: i32, %arg1: i32, %arg2: memref<1x32x64xf32, #tpu.memory_space<vmem>>, %arg3: memref<1x3x64xf32, #tpu.memory_space<vmem>>, %arg4: memref<3x32xf32, #tpu.memory_space<vmem>>, %arg5: memref<3x3xf32, #tpu.memory_space<vmem>>, %arg6: memref<3x1xf32, #tpu.memory_space<vmem>>, %arg7: memref<1x2x64xf32, #tpu.memory_space<vmem>>, %arg8: memref<1x1x64xf32, #tpu.memory_space<vmem>>) attributes {dimension_semantics = [#tpu.dimension_semantics<parallel>, #tpu.dimension_semantics<parallel>], iteration_bounds = array<i64: 2, 1>, scalar_prefetch = 0 : i64, scratch_operands = 0 : i64, tpu.core_type = #tpu.core_type<tc>, window_params = [{transform_indices = @transform_0, window_bounds = array<i64: 1, 32, 64>}, {transform_indices = @transform_1, window_bounds = array<i64: 1, 3, 64>}, {pipeline_mode = #tpu.pipeline_mode<synchronous>, transform_indices = @transform_2, window_bounds = array<i64: 3, 32>}, {pipeline_mode = #tpu.pipeline_mode<synchronous>, transform_indices = @transform_3, window_bounds = array<i64: 3, 3>}, {pipeline_mode = #tpu.pipeline_mode<synchronous>, transform_indices = @transform_4, window_bounds = array<i64: 3, 1>}, {transform_indices = @transform_5, window_bounds = array<i64: 1, 2, 64>}, {transform_indices = @transform_6, window_bounds = array<i64: 1, 1, 64>}]} {
    %c0 = arith.constant 0 : index
    %c0_0 = arith.constant 0 : index
    %c0_1 = arith.constant 0 : index
    %0 = vector.load %arg2[%c0, %c0_0, %c0_1] : memref<1x32x64xf32, #tpu.memory_space<vmem>>, vector<1x32x64xf32>
    %1 = vector.shape_cast %0 : vector<1x32x64xf32> to vector<32x64xf32>
    %c0_2 = arith.constant 0 : index
    %c0_3 = arith.constant 0 : index
    %c0_4 = arith.constant 0 : index
    %2 = vector.load %arg3[%c0_2, %c0_3, %c0_4] : memref<1x3x64xf32, #tpu.memory_space<vmem>>, vector<1x3x64xf32>
    %3 = vector.shape_cast %2 : vector<1x3x64xf32> to vector<3x64xf32>
    %c0_5 = arith.constant 0 : index
    %c0_6 = arith.constant 0 : index
    %4 = vector.load %arg4[%c0_5, %c0_6] : memref<3x32xf32, #tpu.memory_space<vmem>>, vector<3x32xf32>
    %cst = arith.constant dense<0.000000e+00> : vector<3x64xf32>
    %5 = tpu.matmul %4, %1, %cst {dimension_numbers = #tpu.dot_dimension_numbers<[1], [0], [0], [1], [0, 0, 1, 1], [], []>} : vector<3x32xf32>, vector<32x64xf32>, vector<3x64xf32> -> vector<3x64xf32>
    %c0_7 = arith.constant 0 : index
    %c0_8 = arith.constant 0 : index
    %6 = vector.load %arg5[%c0_7, %c0_8] : memref<3x3xf32, #tpu.memory_space<vmem>>, vector<3x3xf32>
    %cst_9 = arith.constant dense<0.000000e+00> : vector<3x64xf32>
    %7 = tpu.matmul %6, %3, %cst_9 {dimension_numbers = #tpu.dot_dimension_numbers<[1], [0], [0], [1], [0, 0, 1, 1], [], []>} : vector<3x3xf32>, vector<3x64xf32>, vector<3x64xf32> -> vector<3x64xf32>
    %8 = arith.addf %5, %7 : vector<3x64xf32>
    %c0_10 = arith.constant 0 : index
    %c0_11 = arith.constant 0 : index
    %9 = vector.load %arg6[%c0_10, %c0_11] : memref<3x1xf32, #tpu.memory_space<vmem>>, vector<3x1xf32>
    %10 = vector.broadcast %9 : vector<3x1xf32> to vector<3x64xf32>
    %11 = arith.addf %8, %10 : vector<3x64xf32>
    %12 = vector.extract_strided_slice %11 {offsets = [0, 0], sizes = [2, 64], strides = [1, 1]} : vector<3x64xf32> to vector<2x64xf32>
    %c0_12 = arith.constant 0 : index
    %c0_13 = arith.constant 0 : index
    %c0_14 = arith.constant 0 : index
    %13 = vector.load %arg7[%c0_12, %c0_13, %c0_14] : memref<1x2x64xf32, #tpu.memory_space<vmem>>, vector<1x2x64xf32>
    %14 = vector.shape_cast %13 : vector<1x2x64xf32> to vector<2x64xf32>
    %15 = vector.shape_cast %12 : vector<2x64xf32> to vector<1x2x64xf32>
    tpu.vector_store %arg7[%c0_12, %c0_13, %c0_14], %15 {strides = array<i32>} : memref<1x2x64xf32, #tpu.memory_space<vmem>>, vector<1x2x64xf32>,
    %16 = vector.extract_strided_slice %11 {offsets = [2, 0], sizes = [1, 64], strides = [1, 1]} : vector<3x64xf32> to vector<1x64xf32>
    %17 = arith.negf %16 : vector<1x64xf32>
    %18 = math.exp %17 : vector<1x64xf32>
    %cst_15 = arith.constant 1.000000e+00 : f32
    %19 = vector.broadcast %cst_15 : f32 to vector<1x64xf32>
    %20 = arith.addf %19, %18 : vector<1x64xf32>
    %21 = arith.divf %19, %20 : vector<1x64xf32>
    %c0_16 = arith.constant 0 : index
    %c0_17 = arith.constant 0 : index
    %c0_18 = arith.constant 0 : index
    %22 = vector.load %arg8[%c0_16, %c0_17, %c0_18] : memref<1x1x64xf32, #tpu.memory_space<vmem>>, vector<1x1x64xf32>
    %23 = vector.shape_cast %22 : vector<1x1x64xf32> to vector<1x64xf32>
    %24 = vector.shape_cast %21 : vector<1x64xf32> to vector<1x1x64xf32>
    tpu.vector_store %arg8[%c0_16, %c0_17, %c0_18], %24 {strides = array<i32>} : memref<1x1x64xf32, #tpu.memory_space<vmem>>, vector<1x1x64xf32>,
    return
  }
  func.func @transform_0(%arg0: i32, %arg1: i32) -> (i32, i32, i32) {
    %c0_i32 = arith.constant 0 : i32
    %c0_i32_0 = arith.constant 0 : i32
    return %arg0, %c0_i32, %arg1 : i32, i32, i32
  }
  func.func @transform_1(%arg0: i32, %arg1: i32) -> (i32, i32, i32) {
    %c0_i32 = arith.constant 0 : i32
    %c0_i32_0 = arith.constant 0 : i32
    return %arg0, %c0_i32, %arg1 : i32, i32, i32
  }
  func.func @transform_2(%arg0: i32, %arg1: i32) -> (i32, i32) {
    %c0_i32 = arith.constant 0 : i32
    %c0_i32_0 = arith.constant 0 : i32
    %c0_i32_1 = arith.constant 0 : i32
    return %c0_i32, %c0_i32_0 : i32, i32
  }
  func.func @transform_3(%arg0: i32, %arg1: i32) -> (i32, i32) {
    %c0_i32 = arith.constant 0 : i32
    %c0_i32_0 = arith.constant 0 : i32
    %c0_i32_1 = arith.constant 0 : i32
    return %c0_i32, %c0_i32_0 : i32, i32
  }
  func.func @transform_4(%arg0: i32, %arg1: i32) -> (i32, i32) {
    %c0_i32 = arith.constant 0 : i32
    %c0_i32_0 = arith.constant 0 : i32
    %c0_i32_1 = arith.constant 0 : i32
    return %c0_i32, %c0_i32_0 : i32, i32
  }
  func.func @transform_5(%arg0: i32, %arg1: i32) -> (i32, i32, i32) {
    %c0_i32 = arith.constant 0 : i32
    %c0_i32_0 = arith.constant 0 : i32
    return %arg0, %c0_i32, %arg1 : i32, i32, i32
  }
  func.func @transform_6(%arg0: i32, %arg1: i32) -> (i32, i32, i32) {
    %c0_i32 = arith.constant 0 : i32
    %c0_i32_0 = arith.constant 0 : i32
    return %arg0, %c0_i32, %arg1 : i32, i32, i32
  }
}

</mosaic_0001>

<llo_original>
// kernel: tpu_custom_call.1
$region0: #{tpu_custom_call.1}
  #allocation0 [shape = 'u32[]', space=smem, size = 0x4, offset = 0x4, fixed_abs, tag = 'smem constant byte address 0x4 - core index']
  #allocation1 [shape = 'u32[144,128]{1,0:T(1,128)}', space=vmem, size = 0x12000, scoped, tag = 'internal scratch']
  %s0 = inlined_call_operand.hbm [shape: f32[2,32,64], index: 0, kind: input, shape index: {}]
  %s1 = inlined_call_operand.vmem [shape: f32[2,3,64], index: 1, kind: input, shape index: {}]
  %s2 = inlined_call_operand.vmem [shape: f32[3,32], index: 2, kind: input, shape index: {}]
  %s3 = inlined_call_operand.vmem [shape: f32[3,3], index: 3, kind: input, shape index: {}]
  %s4 = inlined_call_operand.vmem [shape: f32[3,1], index: 4, kind: input, shape index: {}]
  %s5 = inlined_call_operand.hbm [shape: f32[2,2,64], index: 5, kind: output, shape index: {0}]
  %s6 = inlined_call_operand.hbm [shape: f32[2,1,64], index: 6, kind: output, shape index: {1}]
  %7 = xla_tuple %s5, %s6
  %s8 = sld [smem:[#allocation0]]
  $region65: #{tpu_custom_call.1} parent=0
    _
  %s10 = ssub.s32 1, %s8
  %s11 = scalar_select 0, %s10, %s8
  $region1: #{tpu_custom_call.1} parent=0
    #allocation2 [shape = 'u8[32768]{0}', space=vmem, size = 0x8000, scoped, tag = 'input window, operand 0']
    #allocation3 [shape = 's32[2]{0}', space=sflag, size = 0x8, scoped, tag = 'scoped memory for tpu_custom_call.1']
    #allocation4 [shape = 's32[2]{0}', space=sflag, size = 0x8, scoped, tag = 'scoped memory for tpu_custom_call.1']
    #allocation5 [shape = 'u8[2048]{0}', space=vmem, size = 0x800, scoped, tag = 'output window, operand 0']
    #allocation6 [shape = 'u8[1024]{0}', space=vmem, size = 0x400, scoped, tag = 'output window, operand 1']
    #allocation7 [shape = 's32[2]{0}', space=sflag, size = 0x8, scoped, tag = 'scoped memory for tpu_custom_call.1']
    %12 = vsyncpa [#allocation3], 0
    %s13 = scalar_lea.sflag [#allocation3], 1
    %14 = vsyncpa %s13, 0
    %15 = vsyncpa [#allocation4], 0
    %s16 = scalar_lea.sflag [#allocation4], 1
    %17 = vsyncpa %s16, 0
    %18 = vsyncpa [#allocation7], 0
    %s19 = scalar_lea.sflag [#allocation7], 1
    %20 = vsyncpa %s19, 0
    loop: start=0, step=1, limit=4
    $region2: #{tpu_custom_call.1} parent=1 // loop_pre_header
      _
    $region3: #{tpu_custom_call.1} parent=1 // loop_header
      %s22 = sphi 0, %s26
      %p23 = scmp.ge.s32.totalorder %s22, 4
      %s29 = sphi 0, %s41
      %s30 = sphi 0, %s37
      %s31 = sphi 0, %s29
      %s32 = sphi 0, %s30
      %s33 = sphi 0, %s31
      %s34 = sphi 0, %s32
      %s46 = sphi 0, %s48
      %s49 = sphi 0, %s46
      %s50 = sphi 0, %s49
      %s66 = sphi 0, %s50
      %s74 = sphi 0, %s76
      %s77 = sphi 0, %s74
      %s78 = sphi 0, %s77
      %s94 = sphi 0, %s78
      %s98 = sphi 0, %s98
      %s100 = sphi 0, %s98
      %s101 = sphi 0, %s100
      %s115 = sphi 0, %s101
      %s119 = sphi 0, %s119
      %s121 = sphi 0, %s119
      %s122 = sphi 0, %s121
      %s136 = sphi 0, %s122
      %s140 = sphi 0, %s140
      %s142 = sphi 0, %s140
      %s143 = sphi 0, %s142
      %s157 = sphi 0, %s143
      %s165 = sphi 0, %s167
      %s168 = sphi 0, %s165
      %s169 = sphi 0, %s168
      %s185 = sphi 0, %s169
      %s193 = sphi 0, %s195
      %s196 = sphi 0, %s193
      %s197 = sphi 0, %s196
      %s213 = sphi 0, %s197
    $region4: #{tpu_custom_call.1} parent=1 // loop_header_branch
      %25 = sbr.rel (%p23) target = $region8
    $region5: #{tpu_custom_call.1} parent=1 // loop_body
      %s27 = ssub.s32 %s22, 1
      %s28 = ssub.s32 %s22, 2
      %s35 = sadd.s32 1, %s30
      %p36 = scmp.ge.s32.totalorder %s35, 1
      %s37 = scalar_select %p36, 0, %s35
      %s38 = sadd.s32 1, %s29
      %s39 = scalar_select %p36, %s38, %s29
      %p40 = scmp.ge.s32.totalorder %s39, 2
      %s41 = scalar_select %p40, 0, %s39
      %s42 = ssub.s32 %s29, %s41
      %s43 = ssub.s32 %s30, %s37
      %s44 = sor.u32 %s42, %s43
      %p45 = scmp.eq.s32.totalorder %s44, 0
      %s47 = sadd.s32 %s46, 1
      %s48 = scalar_select %p45, %s46, %s47
      %p51 = pneg %p45
      %p52 = scmp.eq.s32.totalorder %s22, 1
      %p53 = por %p51, %p52
      %p54 = scmp.ne.s32.totalorder %s46, %s49
      %p55 = scmp.eq.s32.totalorder %s22, 0
      %p56 = por %p54, %p55
      %p57 = scmp.ne.s32.totalorder %s46, %s49
      %p58 = scmp.eq.s32.totalorder %s27, 1
      %p59 = por %p57, %p58
      %p60 = scmp.ne.s32.totalorder %s49, %s50
      %p61 = scmp.eq.s32.totalorder %s27, 0
      %p62 = por %p60, %p61
      %p63 = scmp.ne.s32.totalorder %s49, %s50
      %p64 = scmp.eq.s32.totalorder %s28, 1
      %p65 = por %p63, %p64
      %p67 = scmp.ne.s32.totalorder %s50, %s66
      %p68 = scmp.eq.s32.totalorder %s28, 0
      %p69 = por %p67, %p68
      %s70 = ssub.s32 %s29, %s41
      %s71 = ssub.s32 %s30, %s37
      %s72 = sor.u32 %s70, %s71
      %p73 = scmp.eq.s32.totalorder %s72, 0
      %s75 = sadd.s32 %s74, 1
      %s76 = scalar_select %p73, %s74, %s75
      %p79 = pneg %p73
      %p80 = scmp.eq.s32.totalorder %s22, 1
      %p81 = por %p79, %p80
      %p82 = scmp.ne.s32.totalorder %s74, %s77
      %p83 = scmp.eq.s32.totalorder %s22, 0
      %p84 = por %p82, %p83
      %p85 = scmp.ne.s32.totalorder %s74, %s77
      %p86 = scmp.eq.s32.totalorder %s27, 1
      %p87 = por %p85, %p86
      %p88 = scmp.ne.s32.totalorder %s77, %s78
      %p89 = scmp.eq.s32.totalorder %s27, 0
      %p90 = por %p88, %p89
      %p91 = scmp.ne.s32.totalorder %s77, %s78
      %p92 = scmp.eq.s32.totalorder %s28, 1
      %p93 = por %p91, %p92
      %p95 = scmp.ne.s32.totalorder %s78, %s94
      %p96 = scmp.eq.s32.totalorder %s28, 0
      %p97 = por %p95, %p96
      %s99 = sadd.s32 %s98, 1
      %p102 = scmp.eq.s32.totalorder %s22, 1
      %p103 = scmp.ne.s32.totalorder %s98, %s100
      %p104 = scmp.eq.s32.totalorder %s22, 0
      %p105 = por %p103, %p104
      %p106 = scmp.ne.s32.totalorder %s98, %s100
      %p107 = scmp.eq.s32.totalorder %s27, 1
      %p108 = por %p106, %p107
      %p109 = scmp.ne.s32.totalorder %s100, %s101
      %p110 = scmp.eq.s32.totalorder %s27, 0
      %p111 = por %p109, %p110
      %p112 = scmp.ne.s32.totalorder %s100, %s101
      %p113 = scmp.eq.s32.totalorder %s28, 1
      %p114 = por %p112, %p113
      %p116 = scmp.ne.s32.totalorder %s101, %s115
      %p117 = scmp.eq.s32.totalorder %s28, 0
      %p118 = por %p116, %p117
      %s120 = sadd.s32 %s119, 1
      %p123 = scmp.eq.s32.totalorder %s22, 1
      %p124 = scmp.ne.s32.totalorder %s119, %s121
      %p125 = scmp.eq.s32.totalorder %s22, 0
      %p126 = por %p124, %p125
      %p127 = scmp.ne.s32.totalorder %s119, %s121
      %p128 = scmp.eq.s32.totalorder %s27, 1
      %p129 = por %p127, %p128
      %p130 = scmp.ne.s32.totalorder %s121, %s122
      %p131 = scmp.eq.s32.totalorder %s27, 0
      %p132 = por %p130, %p131
      %p133 = scmp.ne.s32.totalorder %s121, %s122
      %p134 = scmp.eq.s32.totalorder %s28, 1
      %p135 = por %p133, %p134
      %p137 = scmp.ne.s32.totalorder %s122, %s136
      %p138 = scmp.eq.s32.totalorder %s28, 0
      %p139 = por %p137, %p138
      %s141 = sadd.s32 %s140, 1
      %p144 = scmp.eq.s32.totalorder %s22, 1
      %p145 = scmp.ne.s32.totalorder %s140, %s142
      %p146 = scmp.eq.s32.totalorder %s22, 0
      %p147 = por %p145, %p146
      %p148 = scmp.ne.s32.totalorder %s140, %s142
      %p149 = scmp.eq.s32.totalorder %s27, 1
      %p150 = por %p148, %p149
      %p151 = scmp.ne.s32.totalorder %s142, %s143
      %p152 = scmp.eq.s32.totalorder %s27, 0
      %p153 = por %p151, %p152
      %p154 = scmp.ne.s32.totalorder %s142, %s143
      %p155 = scmp.eq.s32.totalorder %s28, 1
      %p156 = por %p154, %p155
      %p158 = scmp.ne.s32.totalorder %s143, %s157
      %p159 = scmp.eq.s32.totalorder %s28, 0
      %p160 = por %p158, %p159
      %s161 = ssub.s32 %s29, %s41
      %s162 = ssub.s32 %s30, %s37
      %s163 = sor.u32 %s161, %s162
      %p164 = scmp.eq.s32.totalorder %s163, 0
      %s166 = sadd.s32 %s165, 1
      %s167 = scalar_select %p164, %s165, %s166
      %p170 = pneg %p164
      %p171 = scmp.eq.s32.totalorder %s22, 1
      %p172 = por %p170, %p171
      %p173 = scmp.ne.s32.totalorder %s165, %s168
      %p174 = scmp.eq.s32.totalorder %s22, 0
      %p175 = por %p173, %p174
      %p176 = scmp.ne.s32.totalorder %s165, %s168
      %p177 = scmp.eq.s32.totalorder %s27, 1
      %p178 = por %p176, %p177
      %p179 = scmp.ne.s32.totalorder %s168, %s169
      %p180 = scmp.eq.s32.totalorder %s27, 0
      %p181 = por %p179, %p180
      %p182 = scmp.ne.s32.totalorder %s168, %s169
      %p183 = scmp.eq.s32.totalorder %s28, 1
      %p184 = por %p182, %p183
      %p186 = scmp.ne.s32.totalorder %s169, %s185
      %p187 = scmp.eq.s32.totalorder %s28, 0
      %p188 = por %p186, %p187
      %s189 = ssub.s32 %s29, %s41
      %s190 = ssub.s32 %s30, %s37
      %s191 = sor.u32 %s189, %s190
      %p192 = scmp.eq.s32.totalorder %s191, 0
      %s194 = sadd.s32 %s193, 1
      %s195 = scalar_select %p192, %s193, %s194
      %p198 = pneg %p192
      %p199 = scmp.eq.s32.totalorder %s22, 1
      %p200 = por %p198, %p199
      %p201 = scmp.ne.s32.totalorder %s193, %s196
      %p202 = scmp.eq.s32.totalorder %s22, 0
      %p203 = por %p201, %p202
      %p204 = scmp.ne.s32.totalorder %s193, %s196
      %p205 = scmp.eq.s32.totalorder %s27, 1
      %p206 = por %p204, %p205
      %p207 = scmp.ne.s32.totalorder %s196, %s197
      %p208 = scmp.eq.s32.totalorder %s27, 0
      %p209 = por %p207, %p208
      %p210 = scmp.ne.s32.totalorder %s196, %s197
      %p211 = scmp.eq.s32.totalorder %s28, 1
      %p212 = por %p210, %p211
      %p214 = scmp.ne.s32.totalorder %s197, %s213
      %p215 = scmp.eq.s32.totalorder %s28, 0
      %p216 = por %p214, %p215
      %p217 = scmp.le.s32.totalorder 1, %s22
      %p218 = scmp.lt.s32.totalorder %s22, 3
      %p219 = pnand %p217, %p218
      %p220 = pneg %p219
      // Predicated region
      $region9: #{tpu_custom_call.1} parent=5 // pred_check
        _
      $region10: #{tpu_custom_call.1} parent=5 // pred_check_branch
        %222 = sbr.rel (%p219) target = $region12
      $region11: #{tpu_custom_call.1} parent=5 // pred_region
        %s223 = ssub.s32 %s22, 1
        // Predicated region
        $region13: #{tpu_custom_call.1} parent=11 // pred_check
          %p224 = pneg %p111
        $region14: #{tpu_custom_call.1} parent=11 // pred_check_branch
          %226 = sbr.rel (%p224) target = $region16
        $region15: #{tpu_custom_call.1} parent=11 // pred_region
          _
        $region16: #{tpu_custom_call.1} parent=11 // pred_fallthru
          _
        // Predicated region
        $region17: #{tpu_custom_call.1} parent=11 // pred_check
          %p227 = pneg %p132
        $region18: #{tpu_custom_call.1} parent=11 // pred_check_branch
          %229 = sbr.rel (%p227) target = $region20
        $region19: #{tpu_custom_call.1} parent=11 // pred_region
          _
        $region20: #{tpu_custom_call.1} parent=11 // pred_fallthru
          _
        // Predicated region
        $region21: #{tpu_custom_call.1} parent=11 // pred_check
          %p230 = pneg %p153
        $region22: #{tpu_custom_call.1} parent=11 // pred_check_branch
          %232 = sbr.rel (%p230) target = $region24
        $region23: #{tpu_custom_call.1} parent=11 // pred_region
          _
        $region24: #{tpu_custom_call.1} parent=11 // pred_fallthru
          _
      $region12: #{tpu_custom_call.1} parent=5 // pred_fallthru
        _
      %p233 = scmp.lt.s32.totalorder %s22, 2
      // Predicated region
      $region25: #{tpu_custom_call.1} parent=5 // pred_check
        %p234 = pneg %p233
      $region26: #{tpu_custom_call.1} parent=5 // pred_check_branch
        %236 = sbr.rel (%p234) target = $region28
      $region27: #{tpu_custom_call.1} parent=5 // pred_region
        // Predicated region
        $region29: #{tpu_custom_call.1} parent=27 // pred_check
          %p237 = pneg %p56
        $region30: #{tpu_custom_call.1} parent=27 // pred_check_branch
          %239 = sbr.rel (%p237) target = $region32
        $region31: #{tpu_custom_call.1} parent=27 // pred_region
          %s240 = sand.u32 %s46, 1
          %s241 = scalar_lea.sflag [#allocation3], %s240
          %s242 = sand.u32 %s46, 1
          %s243 = smul.addr %s242, 32
          %s244 = scalar_lea.vmem [#allocation2], %s243
          %s246 = ssub.s32 512, 512
          %247 = vsyncadd %s241, %s246
          %s248 = smul.addr %s29, 4
          %s249 = sadd.s32 %s30, %s248
          %s250 = smul.addr %s249, 128
          %s251 = scalar_lea.hbm %s0, %s250
          %s252 = sshll.u32 %s244, 4
          %s253 = int_to_ptr.vmem [resolvable:$true] %s252
          %258 = dma.hbm_to_vmem [thread:$0]  %s251, 512, %s253, %s241, 128, 128, 8
        $region32: #{tpu_custom_call.1} parent=27 // pred_fallthru
          _
        // Predicated region
        $region33: #{tpu_custom_call.1} parent=27 // pred_check
          %p259 = pneg %p84
        $region34: #{tpu_custom_call.1} parent=27 // pred_check_branch
          %261 = sbr.rel (%p259) target = $region36
        $region35: #{tpu_custom_call.1} parent=27 // pred_region
          %p262 = scmp.lt.s32.totalorder %s29, 1
          %s263 = scalar_select %p262, %s29, 1
          %p264 = scmp.lt.s32.totalorder %s30, 0
          %s265 = scalar_select %p264, %s30, 0
          %s266 = sadd.s32 %s265, %s263
          %s267 = smul.addr %s266, 4
          %s268 = scalar_lea.vmem %s1, %s267
        $region36: #{tpu_custom_call.1} parent=27 // pred_fallthru
          _
      $region28: #{tpu_custom_call.1} parent=5 // pred_fallthru
        _
      %p269 = scmp.le.s32.totalorder 1, %s22
      %p270 = scmp.lt.s32.totalorder %s22, 3
      %p271 = pnand %p269, %p270
      %p272 = pneg %p271
      // Predicated region
      $region37: #{tpu_custom_call.1} parent=5 // pred_check
        _
      $region38: #{tpu_custom_call.1} parent=5 // pred_check_branch
        %274 = sbr.rel (%p271) target = $region40
      $region39: #{tpu_custom_call.1} parent=5 // pred_region
        %s275 = ssub.s32 %s22, 1
        %s276 = sand.u32 %s49, 1
        %s277 = scalar_lea.sflag [#allocation3], %s276
        %s278 = sand.u32 %s49, 1
        %s279 = smul.addr %s278, 32
        %s280 = scalar_lea.vmem [#allocation2], %s279
        // Predicated region
        $region41: #{tpu_custom_call.1} parent=39 // pred_check
          %p281 = pneg %p62
        $region42: #{tpu_custom_call.1} parent=39 // pred_check_branch
          %283 = sbr.rel (%p281) target = $region44
        $region43: #{tpu_custom_call.1} parent=39 // pred_region
          %284 = dma.done %s277, 512
        $region44: #{tpu_custom_call.1} parent=39 // pred_fallthru
          _
        %s285 = sand.u32 %s49, 1
        %s286 = scalar_lea.sflag [#allocation3], %s285
        %s287 = sand.u32 %s49, 1
        %s288 = smul.addr %s287, 32
        %s289 = scalar_lea.vmem [#allocation2], %s288
        %p290 = pneg %p62
        %p291 = pneg %p59
        %p292 = scmp.lt.s32.totalorder %s31, 1
        %s293 = scalar_select %p292, %s31, 1
        %p294 = scmp.lt.s32.totalorder %s32, 0
        %s295 = scalar_select %p294, %s32, 0
        %s296 = sadd.s32 %s295, %s293
        %s297 = smul.addr %s296, 4
        %s298 = scalar_lea.vmem %s1, %s297
        %p299 = pneg %p90
        %p300 = pneg %p87
        %p301 = pneg %p111
        %p302 = pneg %p108
        %p303 = pneg %p132
        %p304 = pneg %p129
        %p305 = pneg %p153
        %p306 = pneg %p150
        %p307 = pneg %p181
        %p308 = pneg %p178
        %s309 = sand.u32 %s168, 1
        %s310 = scalar_lea.sflag [#allocation4], %s309
        %s311 = sand.u32 %s168, 1
        %s312 = smul.addr %s311, 2
        %s313 = scalar_lea.vmem [#allocation5], %s312
        %p314 = pneg %p209
        %p315 = pneg %p206
        %s316 = sand.u32 %s196, 1
        %s317 = scalar_lea.sflag [#allocation7], %s316
        %s318 = sand.u32 %s196, 1
        %s319 = scalar_lea.vmem [#allocation6], %s318
        %p320 = scmp.lt.s32.totalorder %s31, 1
        %s321 = scalar_select %p320, %s31, 1
        %p322 = scmp.lt.s32.totalorder %s32, 0
        %s323 = scalar_select %p322, %s32, 0
        %s324 = sadd.s32 %s323, %s321
        %s325 = smul.addr %s324, 4
        %s326 = scalar_lea.vmem %s1, %s325
        %v327 = vld [vmem:[%s280] sm:$0xff]
        %v328 = vld [vmem:[%s280 + $0x8] sm:$0xff]
        %v329 = vld [vmem:[%s280 + $0x10] sm:$0xff]
        %v330 = vld [vmem:[%s280 + $0x18] sm:$0xff]
        %v331 = vld [vmem:[%s326] sm:$0x7]
        %v332 = vld [vmem:[%s2] sm:$0x7]
        %v333 = vld [vmem:[%s3] sm:$0x7]
        %vm334 = vcmask 23552
        %v336 = vsel %vm334, %v333, 0
        %vm338 = vcmask 1042432
        %v340 = vsel %vm338, %v331, 0
        %342 = vmatprep.subr.mxu0 0.0
        %343 = vmatpush1.msra.mxu0 0.0
        %344 = vmatprep.subr.mxu0 0.0
        %345 = vmatpush1.msra.mxu0 0.0
        %346 = vmatprep.subr.mxu0 0.0
        %347 = vmatpush1.msra.mxu0 0.0
        %348 = vmatprep.subr.mxu0 0.0
        %349 = vmatpush1.msra.mxu0 0.0
        %350 = vmatprep.subr.mxu0 0.0
        %351 = vmatpush1.msra.mxu0 0.0
        %352 = vmatprep.subr.mxu0 0.0
        %353 = vmatpush1.msra.mxu0 0.0
        %354 = vmatprep.subr.mxu0 0.0
        %355 = vmatpush1.msra.mxu0 0.0
        %356 = vmatprep.subr.mxu0 0.0
        %357 = vmatpush1.msra.mxu0 0.0
        %358 = vmatprep.subr.mxu0 0.0
        %359 = vmatpush1.msra.mxu0 0.0
        %360 = vmatprep.subr.mxu0 0.0
        %361 = vmatpush1.msra.mxu0 0.0
        %362 = vmatprep.subr.mxu0 0.0
        %363 = vmatpush1.msra.mxu0 0.0
        %364 = vmatprep.subr.mxu0 0.0
        %365 = vmatpush1.msra.mxu0 0.0
        %366 = vmatprep.subr.mxu0 0.0
        %367 = vmatpush1.msra.mxu0 0.0
        %368 = vmatprep.subr.mxu0 0.0
        %369 = vmatpush1.msra.mxu0 0.0
        %370 = vmatprep.subr.mxu0 0.0
        %371 = vmatpush1.msra.mxu0 0.0
        %372 = vmatprep.subr.mxu0 0.0
        %373 = vmatpush1.msra.mxu0 %v340
        %374 = vmatprep.subr.mxu0 0.0
        %375 = vmatpush2.msra.mxu0 0.0
        %376 = vmatprep.subr.mxu0 0.0
        %377 = vmatpush2.msra.mxu0 0.0
        %378 = vmatprep.subr.mxu0 0.0
        %379 = vmatpush2.msra.mxu0 0.0
        %380 = vmatprep.subr.mxu0 0.0
        %381 = vmatpush2.msra.mxu0 0.0
        %382 = vmatprep.subr.mxu0 0.0
        %383 = vmatpush2.msra.mxu0 0.0
        %384 = vmatprep.subr.mxu0 0.0
        %385 = vmatpush2.msra.mxu0 0.0
        %386 = vmatprep.subr.mxu0 0.0
        %387 = vmatpush2.msra.mxu0 0.0
        %388 = vmatprep.subr.mxu0 0.0
        %389 = vmatpush2.msra.mxu0 0.0
        %390 = vmatprep.subr.mxu0 0.0
        %391 = vmatpush2.msra.mxu0 0.0
        %392 = vmatprep.subr.mxu0 0.0
        %393 = vmatpush2.msra.mxu0 0.0
        %394 = vmatprep.subr.mxu0 0.0
        %395 = vmatpush2.msra.mxu0 0.0
        %396 = vmatprep.subr.mxu0 0.0
        %397 = vmatpush2.msra.mxu0 0.0
        %398 = vmatprep.subr.mxu0 0.0
        %399 = vmatpush2.msra.mxu0 0.0
        %400 = vmatprep.subr.mxu0 0.0
        %401 = vmatpush2.msra.mxu0 0.0
        %402 = vmatprep.subr.mxu0 0.0
        %403 = vmatpush2.msra.mxu0 0.0
        %404 = vmatprep.subr.mxu0 0.0
        %405 = vmatpush2.msra.mxu0 0.0
        %406 = vmatprep.mubr.f32.mxu0 0.0
        %407 = vmatmul.mubr.f32.gmra.mxu0 %v336
        %v408 = vpop.f32.mrf.mxu0
        %v409 = vadd.f32 0.0, %v408
        %v410 = vpop.f32.mrf.mxu0
        %411 = vdwg.mxu0
        %vm412 = vcmask 261120
        %v414 = vsel %vm412, %v332, 0
        %416 = vmatprep.subr.mxu0 0.0
        %417 = vmatpush1.msra.mxu0 0.0
        %418 = vmatprep.subr.mxu0 0.0
        %419 = vmatpush1.msra.mxu0 0.0
        %420 = vmatprep.subr.mxu0 0.0
        %421 = vmatpush1.msra.mxu0 0.0
        %422 = vmatprep.subr.mxu0 0.0
        %423 = vmatpush1.msra.mxu0 0.0
        %424 = vmatprep.subr.mxu0 0.0
        %425 = vmatpush1.msra.mxu0 0.0
        %426 = vmatprep.subr.mxu0 0.0
        %427 = vmatpush1.msra.mxu0 0.0
        %428 = vmatprep.subr.mxu0 0.0
        %429 = vmatpush1.msra.mxu0 0.0
        %430 = vmatprep.subr.mxu0 0.0
        %431 = vmatpush1.msra.mxu0 0.0
        %432 = vmatprep.subr.mxu0 0.0
        %433 = vmatpush1.msra.mxu0 0.0
        %434 = vmatprep.subr.mxu0 0.0
        %435 = vmatpush1.msra.mxu0 0.0
        %436 = vmatprep.subr.mxu0 0.0
        %437 = vmatpush1.msra.mxu0 0.0
        %438 = vmatprep.subr.mxu0 0.0
        %439 = vmatpush1.msra.mxu0 0.0
        %440 = vmatprep.subr.mxu0 0.0
        %441 = vmatpush1.msra.mxu0 %v330
        %442 = vmatprep.subr.mxu0 0.0
        %443 = vmatpush1.msra.mxu0 %v329
        %444 = vmatprep.subr.mxu0 0.0
        %445 = vmatpush1.msra.mxu0 %v328
        %446 = vmatprep.subr.mxu0 0.0
        %447 = vmatpush1.msra.mxu0 %v327
        %448 = vmatprep.subr.mxu0 0.0
        %449 = vmatpush2.msra.mxu0 0.0
        %450 = vmatprep.subr.mxu0 0.0
        %451 = vmatpush2.msra.mxu0 0.0
        %452 = vmatprep.subr.mxu0 0.0
        %453 = vmatpush2.msra.mxu0 0.0
        %454 = vmatprep.subr.mxu0 0.0
        %455 = vmatpush2.msra.mxu0 0.0
        %456 = vmatprep.subr.mxu0 0.0
        %457 = vmatpush2.msra.mxu0 0.0
        %458 = vmatprep.subr.mxu0 0.0
        %459 = vmatpush2.msra.mxu0 0.0
        %460 = vmatprep.subr.mxu0 0.0
        %461 = vmatpush2.msra.mxu0 0.0
        %462 = vmatprep.subr.mxu0 0.0
        %463 = vmatpush2.msra.mxu0 0.0
        %464 = vmatprep.subr.mxu0 0.0
        %465 = vmatpush2.msra.mxu0 0.0
        %466 = vmatprep.subr.mxu0 0.0
        %467 = vmatpush2.msra.mxu0 0.0
        %468 = vmatprep.subr.mxu0 0.0
        %469 = vmatpush2.msra.mxu0 0.0
        %470 = vmatprep.subr.mxu0 0.0
        %471 = vmatpush2.msra.mxu0 0.0
        %472 = vmatprep.subr.mxu0 0.0
        %473 = vmatpush2.msra.mxu0 0.0
        %474 = vmatprep.subr.mxu0 0.0
        %475 = vmatpush2.msra.mxu0 0.0
        %476 = vmatprep.subr.mxu0 0.0
        %477 = vmatpush2.msra.mxu0 0.0
        %478 = vmatprep.subr.mxu0 0.0
        %479 = vmatpush2.msra.mxu0 0.0
        %480 = vmatprep.mubr.f32.mxu0 0.0
        %481 = vmatmul.mubr.f32.gmra.mxu0 %v414
        %v482 = vpop.f32.mrf.mxu0
        %v483 = vadd.f32 %v409, %v482
        %v484 = vpop.f32.mrf.mxu0
        %485 = vdwg.mxu0
        %v486 = vld [vmem:[%s4] sm:$0x7]
        %488 = vset.pattern.permute.xlu0 0
        %489 = vperm.xlu0 %488, %v486
        %v490 = vpop.permute.xlu0 %489
        %v492 = vadd.f32 %v483, %v490
        %vm493 = vcmask 517120
        %494 = vst.msk [vmem:[%s313] sm:$0x3] %vm493, %v492
        %v495 = vxor.u32 %v492, 2147483648
        %v496 = vmul.f32 %v495, 1.442695
        %v497 = vpow.pop %v496
        %v498 = vadd.f32 %v497, 1.0
        %v499 = vrcp.pop %v498
        %v500 = vmul.f32 1.0, %v499
        %vm501 = vcmask 518146
        %502 = vst.msk [vmem:[%s319 - $0x2] sm:$0x4] %vm501, %v500
        %s503 = sand.u32 %s168, 1
        %s504 = scalar_lea.sflag [#allocation4], %s503
        %s505 = sand.u32 %s168, 1
        %s506 = smul.addr %s505, 2
        %s507 = scalar_lea.vmem [#allocation5], %s506
        %s508 = sand.u32 %s196, 1
        %s509 = scalar_lea.sflag [#allocation7], %s508
        %s510 = sand.u32 %s196, 1
        %s511 = scalar_lea.vmem [#allocation6], %s510
        // Predicated region
        $region45: #{tpu_custom_call.1} parent=39 // pred_check
          %p512 = pneg %p178
        $region46: #{tpu_custom_call.1} parent=39 // pred_check_branch
          %514 = sbr.rel (%p512) target = $region48
        $region47: #{tpu_custom_call.1} parent=39 // pred_region
          %s516 = ssub.s32 32, 32
          %517 = vsyncadd %s504, %s516
          %s518 = sadd.s32 %s32, %s31
          %s519 = smul.addr %s518, 32
          %s520 = scalar_lea.hbm %s5, %s519
          %s522 = sshll.u32 %s507, 4
          %s523 = int_to_ptr.vmem [resolvable:$true] %s522
          %525 = dma.vmem_to_hbm [thread:$0]  %s523, 32, %s520, %s504
        $region48: #{tpu_custom_call.1} parent=39 // pred_fallthru
          _
        // Predicated region
        $region49: #{tpu_custom_call.1} parent=39 // pred_check
          %p526 = pneg %p206
        $region50: #{tpu_custom_call.1} parent=39 // pred_check_branch
          %528 = sbr.rel (%p526) target = $region52
        $region51: #{tpu_custom_call.1} parent=39 // pred_region
          %s530 = ssub.s32 16, 16
          %531 = vsyncadd %s509, %s530
          %s532 = sadd.s32 %s32, %s31
          %s533 = smul.addr %s532, 16
          %s534 = scalar_lea.hbm %s6, %s533
          %s536 = sshll.u32 %s511, 4
          %s537 = int_to_ptr.vmem [resolvable:$true] %s536
          %539 = dma.vmem_to_hbm [thread:$0]  %s537, 16, %s534, %s509
        $region52: #{tpu_custom_call.1} parent=39 // pred_fallthru
          _
      $region40: #{tpu_custom_call.1} parent=5 // pred_fallthru
        _
      %p540 = scmp.le.s32.totalorder 2, %s22
      // Predicated region
      $region53: #{tpu_custom_call.1} parent=5 // pred_check
        %p541 = pneg %p540
      $region54: #{tpu_custom_call.1} parent=5 // pred_check_branch
        %543 = sbr.rel (%p541) target = $region56
      $region55: #{tpu_custom_call.1} parent=5 // pred_region
        %s544 = ssub.s32 %s22, 2
        // Predicated region
        $region57: #{tpu_custom_call.1} parent=55 // pred_check
          %p545 = pneg %p184
        $region58: #{tpu_custom_call.1} parent=55 // pred_check_branch
          %547 = sbr.rel (%p545) target = $region60
        $region59: #{tpu_custom_call.1} parent=55 // pred_region
          %s548 = sand.u32 %s169, 1
          %s549 = scalar_lea.sflag [#allocation4], %s548
          %s550 = sand.u32 %s169, 1
          %s551 = smul.addr %s550, 2
          %s552 = scalar_lea.vmem [#allocation5], %s551
          %553 = dma.done %s549, 32
        $region60: #{tpu_custom_call.1} parent=55 // pred_fallthru
          _
        // Predicated region
        $region61: #{tpu_custom_call.1} parent=55 // pred_check
          %p554 = pneg %p212
        $region62: #{tpu_custom_call.1} parent=55 // pred_check_branch
          %556 = sbr.rel (%p554) target = $region64
        $region63: #{tpu_custom_call.1} parent=55 // pred_region
          %s557 = sand.u32 %s197, 1
          %s558 = scalar_lea.sflag [#allocation7], %s557
          %s559 = sand.u32 %s197, 1
          %s560 = scalar_lea.vmem [#allocation6], %s559
          %561 = dma.done %s558, 16
        $region64: #{tpu_custom_call.1} parent=55 // pred_fallthru
          _
      $region56: #{tpu_custom_call.1} parent=5 // pred_fallthru
        _
    $region6: #{tpu_custom_call.1} parent=1 // loop_footer
      %s26 = sadd.s32 1, %s22
    $region7: #{tpu_custom_call.1} parent=1 // loop_footer_branch
      %21 = sbr.rel target = $region3
    $region8: #{tpu_custom_call.1} parent=1 // loop_exit
      _
    %562 = vsyncpa [#allocation3], 1
    %s563 = scalar_lea.sflag [#allocation3], 1
    %564 = vsyncpa %s563, 1
    %565 = vsyncpa [#allocation4], 1
    %s566 = scalar_lea.sflag [#allocation4], 1
    %567 = vsyncpa %s566, 1
    %568 = vsyncpa [#allocation7], 1
    %s569 = scalar_lea.sflag [#allocation7], 1
    %570 = vsyncpa %s569, 1

</llo_original>
